<compile_context>
chip_gen: v5e
topology: v5e:2x2
jax: 0.10.0
libtpu: 0.0.40
codegen_flags: <defaults>
</compile_context>

<pallas_src>
import functools

import jax
import jax.numpy as jnp
from jax.experimental import pallas as pl
from jax.experimental.pallas import tpu as pltpu


def _round_up(a, b):
    return (a + b - 1) // b * b


# ---------------------------------------------------------------------------
# Kernel bodies
# ---------------------------------------------------------------------------

def _pool_step(batch_ref, x_ref, acc_ref, node_axis):
    """One streamed step of global_mean_pool's sum: scatter as one-hot MXU matmul."""
    n = pl.program_id(node_axis)

    @pl.when(n == 0)
    def _init():
        acc_ref[...] = jnp.zeros_like(acc_ref)

    g_pad = acc_ref.shape[0]
    tn = x_ref.shape[0]
    # Graph axis is a single resident block, so rows are graph ids directly:
    # fixed iota compared against the [1, tn] id row (no per-step full-tile add).
    graph_rows = jax.lax.broadcasted_iota(jnp.int32, (g_pad, tn), 0)
    one_hot = (graph_rows == batch_ref[...]).astype(x_ref.dtype)   # 0/1 exact in bf16
    acc_ref[...] += jnp.dot(one_hot, x_ref[...],
                            preferred_element_type=jnp.float32)    # fp32 accumulation


def _head(num_classes, pooled, w1_ref, b1_ref, w2_ref, b2_ref, out_ref):
    """lin1 -> relu -> (dropout = identity) -> lin2 -> clamp -> log_softmax.

    w2/b2 arrive zero-padded to a 128-lane class dim, so both output halves are
    written with dense, unmasked 128-lane stores.
    """
    cp = w2_ref.shape[1]                       # padded class dim (multiple of 128)
    g = pooled.shape[0]

    # Head matmuls are tiny; keep them fully in fp32 for accuracy (costs nothing).
    h = jnp.dot(pooled, w1_ref[...].astype(jnp.float32),
                preferred_element_type=jnp.float32)
    h = jnp.maximum(h + b1_ref[...].astype(jnp.float32), 0.0)

    # dropout(p=0.3): inference mode -> identity.
    # TODO(synk): training-mode dropout would draw pltpu.prng_random_bits here.

    logits = jnp.dot(h, w2_ref[...].astype(jnp.float32),
                     preferred_element_type=jnp.float32)
    logits = jnp.clip(logits + b2_ref[...].astype(jnp.float32), -10.0, 10.0)

    # Numerically stable log_softmax over the real classes only.
    lane = jax.lax.broadcasted_iota(jnp.int32, (g, cp), 1)
    valid = lane < num_classes
    masked = jnp.where(valid, logits, jnp.float32(-1e30))
    m = jnp.max(masked, axis=-1, keepdims=True)
    shifted = masked - m
    lse = jnp.log(jnp.sum(jnp.where(valid, jnp.exp(shifted), 0.0),
                          axis=-1, keepdims=True))

    out_ref[:, :cp] = shifted - lse            # log_softmax half (dense 128-lane store)
    out_ref[:, cp:] = logits                   # clamped logits half (dense 128-lane store)


def _fused_kernel(num_classes, x_ref, batch_ref, invc_ref,
                  w1_ref, b1_ref, w2_ref, b2_ref, out_ref, acc_ref):
    """Single-pass kernel: grid = (N_pad // tile_n,), graph axis fully resident."""
    _pool_step(batch_ref, x_ref, acc_ref, node_axis=0)

    @pl.when(pl.program_id(0) == pl.num_programs(0) - 1)
    def _finalize():
        pooled = acc_ref[...] * invc_ref[...]          # mean = sum * (1 / count)
        _head(num_classes, pooled, w1_ref, b1_ref, w2_ref, b2_ref, out_ref)


def _pool_partial_kernel(x_ref, batch_ref, partial_ref, acc_ref):
    """Node-sharded pooling: each shard (TensorCore) sums its disjoint node slice."""
    _pool_step(batch_ref, x_ref, acc_ref, node_axis=1)

    @pl.when(pl.program_id(1) == pl.num_programs(1) - 1)
    def _write():
        partial_ref[...] = acc_ref[...][None, :, :]


def _head_kernel(num_classes, partial_ref, invc_ref,
                 w1_ref, b1_ref, w2_ref, b2_ref, out_ref):
    pooled = jnp.sum(partial_ref[...], axis=0) * invc_ref[...]
    _head(num_classes, pooled, w1_ref, b1_ref, w2_ref, b2_ref, out_ref)


# ---------------------------------------------------------------------------
# Wrapper
# ---------------------------------------------------------------------------

def _vmem_bytes(shape, dtype):
    """Conservative VMEM footprint of one buffer under (8,128) tiling."""
    lead = 1
    for s in shape[:-2]:
        lead *= s
    rows = _round_up(shape[-2], 8)
    cols = _round_up(shape[-1], 128)
    return lead * rows * cols * jnp.dtype(dtype).itemsize


def predictor_forward(x, batch, w1, b1, w2, b2, *, num_graphs,
                      tile_n=None, num_node_shards=1):
    N, D = x.shape
    H = w1.shape[1]
    C = w2.shape[1]
    G = num_graphs
    P = int(num_node_shards)
    assert P >= 1, "num_node_shards must be >= 1"

    batch = batch.astype(jnp.int32)

    # Per-graph inverse counts: tiny [G] op outside the kernel (original ids only).
    counts = jnp.bincount(batch, length=G).astype(jnp.float32)
    inv_counts = 1.0 / jnp.maximum(counts, 1.0)

    # Pad graph axis to the sublane multiple; padded rows pool to zero and are sliced off.
    G_pad = _round_up(max(G, 1), 8)
    inv_counts = jnp.pad(inv_counts, (0, G_pad - G)).reshape(G_pad, 1)

    # Node tile: multiple of 256 (MXU-native contraction K), sized so the
    # double-buffered, lane-padded x window stays around <= 8 MiB.
    if tile_n is None:
        lane_d = _round_up(D, 128)
        budget_rows = (8 << 20) // (2 * lane_d * jnp.dtype(x.dtype).itemsize)
        tile_n = max(256, min(8192, (budget_rows // 256) * 256))
        tile_n = min(tile_n, _round_up(N, 256))
    assert tile_n > 0 and tile_n % 128 == 0, "tile_n must be a positive multiple of 128"

    # Pad N so the grid never truncates and every tile is a full MXU pass;
    # padded nodes get an out-of-range graph id -> all-zero one-hot columns.
    N_pad = _round_up(N, tile_n * P)
    if N_pad != N:
        x = jnp.pad(x, ((0, N_pad - N), (0, 0)))
        batch = jnp.pad(batch, (0, N_pad - N), constant_values=G_pad)
    batch2d = batch.reshape(1, N_pad)

    # Pad the class dim of lin2 to 128 lanes so both output halves are written with
    # dense unmasked stores; sliced back to C in the wrapper.
    CP = _round_up(C, 128)
    w2p = jnp.zeros((H, CP), w2.dtype).at[:, :C].set(w2)
    b2p = jnp.zeros((1, CP), b2.dtype).at[0, :C].set(b2)
    b1_2d = b1.reshape(1, H)
    out_w = 2 * CP

    # VMEM budget derived from actual (layout-padded, double-buffered) buffers.
    vmem = (2 * _vmem_bytes((tile_n, D), x.dtype)
            + 2 * _vmem_bytes((1, tile_n), jnp.int32)
            + 2 * _vmem_bytes((G_pad, 1), jnp.float32)
            + 2 * _vmem_bytes((D, H), w1.dtype)
            + 2 * _vmem_bytes((1, H), b1.dtype)
            + 2 * _vmem_bytes((H, CP), w2.dtype)
            + 2 * _vmem_bytes((1, CP), b2.dtype)
            + 2 * _vmem_bytes((G_pad, out_w), jnp.float32)
            + 2 * _vmem_bytes((P, G_pad, D), jnp.float32)
            + _vmem_bytes((G_pad, D), jnp.float32))
    vmem_limit = int(min(max(vmem + (4 << 20), 8 << 20), 96 << 20))

    if P == 1:
        # x (and every other input) is DMA'd from HBM exactly once.
        out = pl.pallas_call(
            functools.partial(_fused_kernel, C),
            out_shape=jax.ShapeDtypeStruct((G_pad, out_w), jnp.float32),
            grid_spec=pltpu.PrefetchScalarGridSpec(
                num_scalar_prefetch=0,
                grid=(N_pad // tile_n,),
                in_specs=[
                    pl.BlockSpec((tile_n, D), lambda n: (n, 0)),     # x (streamed)
                    pl.BlockSpec((1, tile_n), lambda n: (0, n)),     # graph ids
                    pl.BlockSpec((G_pad, 1), lambda n: (0, 0)),      # 1 / counts
                    pl.BlockSpec((D, H), lambda n: (0, 0)),          # w1
                    pl.BlockSpec((1, H), lambda n: (0, 0)),          # b1
                    pl.BlockSpec((H, CP), lambda n: (0, 0)),         # w2 (lane-padded)
                    pl.BlockSpec((1, CP), lambda n: (0, 0)),         # b2 (lane-padded)
                ],
                out_specs=pl.BlockSpec((G_pad, out_w), lambda n: (0, 0)),
                scratch_shapes=[pltpu.VMEM((G_pad, D), jnp.float32)],
            ),
            compiler_params=pltpu.CompilerParams(
                dimension_semantics=("arbitrary",),
                vmem_limit_bytes=vmem_limit,
            ),
        )(x, batch2d, inv_counts, w1, b1_2d, w2p, b2p)
    else:
        # Node axis sharded across P cores (v7x megacore): each core streams a
        # disjoint slice of x once and writes its own [G_pad, D] partial sum; a
        # tiny second kernel combines the partials and runs the MLP head.
        tiles_per_shard = N_pad // (tile_n * P)
        partials = pl.pallas_call(
            _pool_partial_kernel,
            out_shape=jax.ShapeDtypeStruct((P, G_pad, D), jnp.float32),
            grid_spec=pltpu.PrefetchScalarGridSpec(
                num_scalar_prefetch=0,
                grid=(P, tiles_per_shard),
                in_specs=[
                    pl.BlockSpec((tile_n, D),
                                 lambda p, n: (p * tiles_per_shard + n, 0)),
                    pl.BlockSpec((1, tile_n),
                                 lambda p, n: (0, p * tiles_per_shard + n)),
                ],
                out_specs=pl.BlockSpec((1, G_pad, D), lambda p, n: (p, 0, 0)),
                scratch_shapes=[pltpu.VMEM((G_pad, D), jnp.float32)],
            ),
            compiler_params=pltpu.CompilerParams(
                dimension_semantics=("parallel", "arbitrary"),
                vmem_limit_bytes=vmem_limit,
            ),
        )(x, batch2d)

        out = pl.pallas_call(
            functools.partial(_head_kernel, C),
            out_shape=jax.ShapeDtypeStruct((G_pad, out_w), jnp.float32),
            grid_spec=pltpu.PrefetchScalarGridSpec(
                num_scalar_prefetch=0,
                grid=(1,),
                in_specs=[
                    pl.BlockSpec((P, G_pad, D), lambda i: (0, 0, 0)),
                    pl.BlockSpec((G_pad, 1), lambda i: (0, 0)),
                    pl.BlockSpec((D, H), lambda i: (0, 0)),
                    pl.BlockSpec((1, H), lambda i: (0, 0)),
                    pl.BlockSpec((H, CP), lambda i: (0, 0)),
                    pl.BlockSpec((1, CP), lambda i: (0, 0)),
                ],
                out_specs=pl.BlockSpec((G_pad, out_w), lambda i: (0, 0)),
            ),
        )(partials, inv_counts, w1, b1_2d, w2p, b2p)

    logp = out[:G, :C]
    logits = out[:G, CP:CP + C]
    return logp, logits


def reference_forward(x, batch, w1, b1, w2, b2, *, num_graphs):
    # Pure-JAX fp32 reference for correctness checking.
    x = x.astype(jnp.float32)
    w1 = w1.astype(jnp.float32); b1 = b1.astype(jnp.float32)
    w2 = w2.astype(jnp.float32); b2 = b2.astype(jnp.float32)
    one_hot = (jnp.arange(num_graphs)[:, None] == batch[None, :]).astype(jnp.float32)
    pooled = (one_hot @ x) / jnp.maximum(one_hot.sum(-1, keepdims=True), 1.0)
    h = jnp.maximum(pooled @ w1 + b1, 0.0)
    logits = jnp.clip(h @ w2 + b2, -10.0, 10.0)
    return jax.nn.log_softmax(logits, axis=-1), logits


if __name__ == "__main__":
    key = jax.random.PRNGKey(0)
    kx, k1, k2, k3, k4 = jax.random.split(key, 5)

    # Shapes implied by the module: D=input_dim, H=hidden_dim, C=num_classes.
    N, D, H, C, G = 32, 16, 32, 8, 4
    x = jax.random.normal(kx, (N, D), dtype=jnp.float32)
    batch = jnp.repeat(jnp.arange(G, dtype=jnp.int32), N // G)
    w1 = jax.random.normal(k1, (D, H), dtype=jnp.float32) * (1.0 / jnp.sqrt(D))
    b1 = jax.random.normal(k2, (H,), dtype=jnp.float32) * 0.01
    w2 = jax.random.normal(k3, (H, C), dtype=jnp.float32) * (1.0 / jnp.sqrt(H))
    b2 = jax.random.normal(k4, (C,), dtype=jnp.float32) * 0.01

    # ---- Test 1: toy shapes, fp32, single fused kernel ----
    logp, logits = predictor_forward(x, batch, w1, b1, w2, b2, num_graphs=G)
    jax.block_until_ready((logp, logits))
    rlogp, rlogits = reference_forward(x, batch, w1, b1, w2, b2, num_graphs=G)
    assert jnp.allclose(logits, rlogits, atol=1e-4), "fp32 logits mismatch"
    assert jnp.allclose(logp, rlogp, atol=1e-4), "fp32 log_softmax mismatch"

    # ---- Test 2: bf16 inputs/weights, fp32 accumulation + fp32 head ----
    xb = x.astype(jnp.bfloat16)
    w1b, b1b = w1.astype(jnp.bfloat16), b1.astype(jnp.bfloat16)
    w2b, b2b = w2.astype(jnp.bfloat16), b2.astype(jnp.bfloat16)
    logp_b, logits_b = predictor_forward(xb, batch, w1b, b1b, w2b, b2b, num_graphs=G)
    jax.block_until_ready((logp_b, logits_b))
    rlogp_b, rlogits_b = reference_forward(xb, batch, w1b, b1b, w2b, b2b, num_graphs=G)
    assert jnp.allclose(logits_b, rlogits_b, atol=1e-1), "bf16 logits mismatch"
    assert jnp.allclose(logp_b, rlogp_b, atol=1e-1), "bf16 log_softmax mismatch"

    # ---- Test 3: larger N / G, unsorted ids, multi-tile N reduction ----
    N2, G2 = 1024, 16
    kx2, kb2 = jax.random.split(jax.random.PRNGKey(1), 2)
    x2 = jax.random.normal(kx2, (N2, D), dtype=jnp.float32)
    batch2 = jax.random.randint(kb2, (N2,), 0, G2, dtype=jnp.int32)
    logp2, logits2 = predictor_forward(x2, batch2, w1, b1, w2, b2,
                                       num_graphs=G2, tile_n=256)
    jax.block_until_ready((logp2, logits2))
    rlogp2, rlogits2 = reference_forward(x2, batch2, w1, b1, w2, b2, num_graphs=G2)
    assert jnp.allclose(logits2, rlogits2, atol=1e-3), "tiled logits mismatch"
    assert jnp.allclose(logp2, rlogp2, atol=1e-3), "tiled log_softmax mismatch"

    # ---- Test 4: node axis sharded across 2 cores (v7x megacore path; valid on any TPU) ----
    logp3, logits3 = predictor_forward(x2, batch2, w1, b1, w2, b2,
                                       num_graphs=G2, tile_n=256, num_node_shards=2)
    jax.block_until_ready((logp3, logits3))
    assert jnp.allclose(logits3, rlogits2, atol=1e-3), "sharded logits mismatch"
    assert jnp.allclose(logp3, rlogp2, atol=1e-3), "sharded log_softmax mismatch"

    print("KERNEL_OK")
</pallas_src>

<mosaic_0001>
module attributes {stable_mosaic.version = 11 : i64} {
  func.func @_fused_kernel(%arg0: i32, %arg1: memref<256x16xf32, #tpu.memory_space<vmem>>, %arg2: memref<1x256xi32, #tpu.memory_space<vmem>>, %arg3: memref<8x1xf32, #tpu.memory_space<vmem>>, %arg4: memref<16x32xf32, #tpu.memory_space<vmem>>, %arg5: memref<1x32xf32, #tpu.memory_space<vmem>>, %arg6: memref<32x128xf32, #tpu.memory_space<vmem>>, %arg7: memref<1x128xf32, #tpu.memory_space<vmem>>, %arg8: memref<8x256xf32, #tpu.memory_space<vmem>>, %arg9: memref<8x16xf32, #tpu.memory_space<vmem>>) attributes {dimension_semantics = [#tpu.dimension_semantics<arbitrary>], iteration_bounds = array<i64: 1>, scalar_prefetch = 0 : i64, scratch_operands = 1 : i64, tpu.core_type = #tpu.core_type<tc>, window_params = [{transform_indices = @transform_0, window_bounds = array<i64: 256, 16>}, {transform_indices = @transform_1, window_bounds = array<i64: 1, 256>}, {pipeline_mode = #tpu.pipeline_mode<synchronous>, transform_indices = @transform_2, window_bounds = array<i64: 8, 1>}, {pipeline_mode = #tpu.pipeline_mode<synchronous>, transform_indices = @transform_3, window_bounds = array<i64: 16, 32>}, {pipeline_mode = #tpu.pipeline_mode<synchronous>, transform_indices = @transform_4, window_bounds = array<i64: 1, 32>}, {pipeline_mode = #tpu.pipeline_mode<synchronous>, transform_indices = @transform_5, window_bounds = array<i64: 32, 128>}, {pipeline_mode = #tpu.pipeline_mode<synchronous>, transform_indices = @transform_6, window_bounds = array<i64: 1, 128>}, {pipeline_mode = #tpu.pipeline_mode<synchronous>, transform_indices = @transform_7, window_bounds = array<i64: 8, 256>}]} {
    %c0_i32 = arith.constant 0 : i32
    %0 = arith.cmpi eq, %arg0, %c0_i32 : i32
    %1 = arith.extui %0 : i1 to i32
    %c0_i32_0 = arith.constant 0 : i32
    %2 = arith.cmpi ne, %1, %c0_i32_0 : i32
    scf.if %2 {
      %cst_10 = arith.constant 0.000000e+00 : f32
      %17 = vector.broadcast %cst_10 : f32 to vector<8x16xf32>
      %c0_11 = arith.constant 0 : index
      %c0_12 = arith.constant 0 : index
      %18 = vector.load %arg9[%c0_11, %c0_12] : memref<8x16xf32, #tpu.memory_space<vmem>>, vector<8x16xf32>
      tpu.vector_store %arg9[%c0_11, %c0_12], %17 {strides = array<i32>} : memref<8x16xf32, #tpu.memory_space<vmem>>, vector<8x16xf32>,
    } else {
    }
    %3 = tpu.iota {dimensions = array<i32: 0>} : vector<8x256xi32>
    %c0 = arith.constant 0 : index
    %c0_1 = arith.constant 0 : index
    %4 = vector.load %arg2[%c0, %c0_1] : memref<1x256xi32, #tpu.memory_space<vmem>>, vector<1x256xi32>
    %5 = vector.broadcast %4 : vector<1x256xi32> to vector<8x256xi32>
    %6 = arith.cmpi eq, %3, %5 : vector<8x256xi32>
    %7 = arith.extui %6 : vector<8x256xi1> to vector<8x256xi32>
    %8 = arith.sitofp %7 : vector<8x256xi32> to vector<8x256xf32>
    %c0_2 = arith.constant 0 : index
    %c0_3 = arith.constant 0 : index
    %9 = vector.load %arg9[%c0_2, %c0_3] : memref<8x16xf32, #tpu.memory_space<vmem>>, vector<8x16xf32>
    %c0_4 = arith.constant 0 : index
    %c0_5 = arith.constant 0 : index
    %10 = vector.load %arg1[%c0_4, %c0_5] : memref<256x16xf32, #tpu.memory_space<vmem>>, vector<256x16xf32>
    %cst = arith.constant dense<0.000000e+00> : vector<8x16xf32>
    %11 = tpu.matmul %8, %10, %cst {dimension_numbers = #tpu.dot_dimension_numbers<[1], [0], [0], [1], [0, 0, 1, 1], [], []>} : vector<8x256xf32>, vector<256x16xf32>, vector<8x16xf32> -> vector<8x16xf32>
    %12 = arith.addf %9, %11 : vector<8x16xf32>
    %c0_6 = arith.constant 0 : index
    %c0_7 = arith.constant 0 : index
    %13 = vector.load %arg9[%c0_6, %c0_7] : memref<8x16xf32, #tpu.memory_space<vmem>>, vector<8x16xf32>
    tpu.vector_store %arg9[%c0_6, %c0_7], %12 {strides = array<i32>} : memref<8x16xf32, #tpu.memory_space<vmem>>, vector<8x16xf32>,
    %c0_i32_8 = arith.constant 0 : i32
    %14 = arith.cmpi eq, %arg0, %c0_i32_8 : i32
    %15 = arith.extui %14 : i1 to i32
    %c0_i32_9 = arith.constant 0 : i32
    %16 = arith.cmpi ne, %15, %c0_i32_9 : i32
    scf.if %16 {
      %c0_10 = arith.constant 0 : index
      %c0_11 = arith.constant 0 : index
      %17 = vector.load %arg9[%c0_10, %c0_11] : memref<8x16xf32, #tpu.memory_space<vmem>>, vector<8x16xf32>
      %c0_12 = arith.constant 0 : index
      %c0_13 = arith.constant 0 : index
      %18 = vector.load %arg3[%c0_12, %c0_13] : memref<8x1xf32, #tpu.memory_space<vmem>>, vector<8x1xf32>
      %19 = vector.broadcast %18 : vector<8x1xf32> to vector<8x16xf32>
      %20 = arith.mulf %17, %19 : vector<8x16xf32>
      %c0_14 = arith.constant 0 : index
      %c0_15 = arith.constant 0 : index
      %21 = vector.load %arg4[%c0_14, %c0_15] : memref<16x32xf32, #tpu.memory_space<vmem>>, vector<16x32xf32>
      %cst_16 = arith.constant dense<0.000000e+00> : vector<8x32xf32>
      %22 = tpu.matmul %20, %21, %cst_16 {dimension_numbers = #tpu.dot_dimension_numbers<[1], [0], [0], [1], [0, 0, 1, 1], [], []>} : vector<8x16xf32>, vector<16x32xf32>, vector<8x32xf32> -> vector<8x32xf32>
      %c0_17 = arith.constant 0 : index
      %c0_18 = arith.constant 0 : index
      %23 = vector.load %arg5[%c0_17, %c0_18] : memref<1x32xf32, #tpu.memory_space<vmem>>, vector<1x32xf32>
      %24 = vector.broadcast %23 : vector<1x32xf32> to vector<8x32xf32>
      %25 = arith.addf %22, %24 : vector<8x32xf32>
      %cst_19 = arith.constant 0.000000e+00 : f32
      %26 = vector.broadcast %cst_19 : f32 to vector<8x32xf32>
      %27 = arith.maximumf %25, %26 : vector<8x32xf32>
      %c0_20 = arith.constant 0 : index
      %c0_21 = arith.constant 0 : index
      %28 = vector.load %arg6[%c0_20, %c0_21] : memref<32x128xf32, #tpu.memory_space<vmem>>, vector<32x128xf32>
      %cst_22 = arith.constant dense<0.000000e+00> : vector<8x128xf32>
      %29 = tpu.matmul %27, %28, %cst_22 {dimension_numbers = #tpu.dot_dimension_numbers<[1], [0], [0], [1], [0, 0, 1, 1], [], []>} : vector<8x32xf32>, vector<32x128xf32>, vector<8x128xf32> -> vector<8x128xf32>
      %c0_23 = arith.constant 0 : index
      %c0_24 = arith.constant 0 : index
      %30 = vector.load %arg7[%c0_23, %c0_24] : memref<1x128xf32, #tpu.memory_space<vmem>>, vector<1x128xf32>
      %31 = vector.broadcast %30 : vector<1x128xf32> to vector<8x128xf32>
      %32 = arith.addf %29, %31 : vector<8x128xf32>
      %cst_25 = arith.constant -1.000000e+01 : f32
      %cst_26 = arith.constant 1.000000e+01 : f32
      %33 = vector.broadcast %cst_25 : f32 to vector<8x128xf32>
      %34 = arith.maximumf %33, %32 : vector<8x128xf32>
      %35 = vector.broadcast %cst_26 : f32 to vector<8x128xf32>
      %36 = arith.minimumf %35, %34 : vector<8x128xf32>
      %37 = tpu.iota {dimensions = array<i32: 1>} : vector<8x128xi32>
      %c8_i32 = arith.constant 8 : i32
      %38 = vector.broadcast %c8_i32 : i32 to vector<8x128xi32>
      %39 = arith.cmpi slt, %37, %38 : vector<8x128xi32>
      %cst_27 = arith.constant -1.000000e+30 : f32
      %40 = vector.broadcast %cst_27 : f32 to vector<8x128xf32>
      %41 = arith.select %39, %36, %40 : vector<8x128xi1>, vector<8x128xf32>
      %cst_28 = arith.constant dense<0xFF800000> : vector<8xf32>
      %42 = vector.multi_reduction <maximumf>, %41, %cst_28 [1] : vector<8x128xf32> to vector<8xf32>
      %43 = vector.shape_cast %42 : vector<8xf32> to vector<8x1xf32>
      %44 = vector.broadcast %43 : vector<8x1xf32> to vector<8x128xf32>
      %45 = arith.subf %41, %44 : vector<8x128xf32>
      %46 = math.exp %45 : vector<8x128xf32>
      %cst_29 = arith.constant 0.000000e+00 : f32
      %47 = vector.broadcast %cst_29 : f32 to vector<8x128xf32>
      %48 = arith.select %39, %46, %47 : vector<8x128xi1>, vector<8x128xf32>
      %cst_30 = arith.constant dense<0.000000e+00> : vector<8xf32>
      %49 = vector.multi_reduction <add>, %48, %cst_30 [1] : vector<8x128xf32> to vector<8xf32>
      %50 = vector.shape_cast %49 : vector<8xf32> to vector<8x1xf32>
      %51 = math.log %50 : vector<8x1xf32>
      %52 = vector.broadcast %51 : vector<8x1xf32> to vector<8x128xf32>
      %53 = arith.subf %45, %52 : vector<8x128xf32>
      %c0_31 = arith.constant 0 : index
      %c0_32 = arith.constant 0 : index
      %54 = vector.load %arg8[%c0_31, %c0_32] : memref<8x256xf32, #tpu.memory_space<vmem>>, vector<8x128xf32>
      tpu.vector_store %arg8[%c0_31, %c0_32], %53 {strides = array<i32>} : memref<8x256xf32, #tpu.memory_space<vmem>>, vector<8x128xf32>,
      %c0_33 = arith.constant 0 : index
      %c128 = arith.constant 128 : index
      %55 = vector.load %arg8[%c0_33, %c128] : memref<8x256xf32, #tpu.memory_space<vmem>>, vector<8x128xf32>
      tpu.vector_store %arg8[%c0_33, %c128], %36 {strides = array<i32>} : memref<8x256xf32, #tpu.memory_space<vmem>>, vector<8x128xf32>,
    } else {
    }
    return
  }
  func.func @transform_0(%arg0: i32) -> (i32, i32) {
    %c0_i32 = arith.constant 0 : i32
    %c0_i32_0 = arith.constant 0 : i32
    return %arg0, %c0_i32 : i32, i32
  }
  func.func @transform_1(%arg0: i32) -> (i32, i32) {
    %c0_i32 = arith.constant 0 : i32
    %c0_i32_0 = arith.constant 0 : i32
    return %c0_i32, %arg0 : i32, i32
  }
  func.func @transform_2(%arg0: i32) -> (i32, i32) {
    %c0_i32 = arith.constant 0 : i32
    %c0_i32_0 = arith.constant 0 : i32
    %c0_i32_1 = arith.constant 0 : i32
    return %c0_i32, %c0_i32_0 : i32, i32
  }
  func.func @transform_3(%arg0: i32) -> (i32, i32) {
    %c0_i32 = arith.constant 0 : i32
    %c0_i32_0 = arith.constant 0 : i32
    %c0_i32_1 = arith.constant 0 : i32
    return %c0_i32, %c0_i32_0 : i32, i32
  }
  func.func @transform_4(%arg0: i32) -> (i32, i32) {
    %c0_i32 = arith.constant 0 : i32
    %c0_i32_0 = arith.constant 0 : i32
    %c0_i32_1 = arith.constant 0 : i32
    return %c0_i32, %c0_i32_0 : i32, i32
  }
  func.func @transform_5(%arg0: i32) -> (i32, i32) {
    %c0_i32 = arith.constant 0 : i32
    %c0_i32_0 = arith.constant 0 : i32
    %c0_i32_1 = arith.constant 0 : i32
    return %c0_i32, %c0_i32_0 : i32, i32
  }
  func.func @transform_6(%arg0: i32) -> (i32, i32) {
    %c0_i32 = arith.constant 0 : i32
    %c0_i32_0 = arith.constant 0 : i32
    %c0_i32_1 = arith.constant 0 : i32
    return %c0_i32, %c0_i32_0 : i32, i32
  }
  func.func @transform_7(%arg0: i32) -> (i32, i32) {
    %c0_i32 = arith.constant 0 : i32
    %c0_i32_0 = arith.constant 0 : i32
    %c0_i32_1 = arith.constant 0 : i32
    return %c0_i32, %c0_i32_0 : i32, i32
  }
}

</mosaic_0001>

<llo_original>
// kernel: tpu_custom_call.1
$region0: #{tpu_custom_call.1}
  #allocation0 [shape = 'u32[]', space=smem, size = 0x4, offset = 0x4, fixed_abs, tag = 'smem constant byte address 0x4 - core index']
  #allocation1 [shape = 'u32[72,128]{1,0:T(1,128)}', space=vmem, size = 0x9000, scoped, tag = 'internal scratch']
  #allocation2 [shape = 'f32[8,16]{1,0:T(8,128)}', space=vmem, size = 0x1000, scoped, tag = 'scratch operand']
  %s0 = inlined_call_operand.vmem [shape: f32[256,16], index: 0, kind: input, shape index: {}]
  %s1 = inlined_call_operand.vmem [shape: s32[1,256], index: 1, kind: input, shape index: {}]
  %s2 = inlined_call_operand.vmem [shape: f32[8,1], index: 2, kind: input, shape index: {}]
  %s3 = inlined_call_operand.vmem [shape: f32[16,32], index: 3, kind: input, shape index: {}]
  %s4 = inlined_call_operand.vmem [shape: f32[1,32], index: 4, kind: input, shape index: {}]
  %s5 = inlined_call_operand.vmem [shape: f32[32,128], index: 5, kind: input, shape index: {}]
  %s6 = inlined_call_operand.vmem [shape: f32[1,128], index: 6, kind: input, shape index: {}]
  %s7 = inlined_call_operand.hbm [shape: f32[8,256], index: 7, kind: output, shape index: {}]
  %s8 = sld [smem:[#allocation0]]
  $region46: #{tpu_custom_call.1} parent=0
    _
  %s10 = ssub.s32 1, %s8
  %s11 = scalar_select 0, %s10, %s8
  $region1: #{tpu_custom_call.1} parent=0
    #allocation3 [shape = 'u8[8192]{0}', space=vmem, size = 0x2000, scoped, tag = 'output window, operand 0, single buffered']
    #allocation4 [shape = 's32[1]{0}', space=sflag, size = 0x4, scoped, tag = 'scoped memory for tpu_custom_call.1']
    %12 = vsyncpa [#allocation4], 0
    // Predicated region
    $region2: #{tpu_custom_call.1} parent=1 // pred_check
      _
    $region3: #{tpu_custom_call.1} parent=1 // pred_check_branch
      %14 = sbr.rel (0) target = $region5
    $region4: #{tpu_custom_call.1} parent=1 // pred_region
      _
    $region5: #{tpu_custom_call.1} parent=1 // pred_fallthru
      _
    // Predicated region
    $region6: #{tpu_custom_call.1} parent=1 // pred_check
      _
    $region7: #{tpu_custom_call.1} parent=1 // pred_check_branch
      %16 = sbr.rel (0) target = $region9
    $region8: #{tpu_custom_call.1} parent=1 // pred_region
      _
    $region9: #{tpu_custom_call.1} parent=1 // pred_fallthru
      _
    // Predicated region
    $region10: #{tpu_custom_call.1} parent=1 // pred_check
      _
    $region11: #{tpu_custom_call.1} parent=1 // pred_check_branch
      %18 = sbr.rel (0) target = $region13
    $region12: #{tpu_custom_call.1} parent=1 // pred_region
      _
    $region13: #{tpu_custom_call.1} parent=1 // pred_fallthru
      _
    // Predicated region
    $region14: #{tpu_custom_call.1} parent=1 // pred_check
      _
    $region15: #{tpu_custom_call.1} parent=1 // pred_check_branch
      %20 = sbr.rel (0) target = $region17
    $region16: #{tpu_custom_call.1} parent=1 // pred_region
      _
    $region17: #{tpu_custom_call.1} parent=1 // pred_fallthru
      _
    // Predicated region
    $region18: #{tpu_custom_call.1} parent=1 // pred_check
      _
    $region19: #{tpu_custom_call.1} parent=1 // pred_check_branch
      %22 = sbr.rel (0) target = $region21
    $region20: #{tpu_custom_call.1} parent=1 // pred_region
      _
    $region21: #{tpu_custom_call.1} parent=1 // pred_fallthru
      _
    // Predicated region
    $region22: #{tpu_custom_call.1} parent=1 // pred_check
      _
    $region23: #{tpu_custom_call.1} parent=1 // pred_check_branch
      %24 = sbr.rel (0) target = $region25
    $region24: #{tpu_custom_call.1} parent=1 // pred_region
      _
    $region25: #{tpu_custom_call.1} parent=1 // pred_fallthru
      _
    // Predicated region
    $region26: #{tpu_custom_call.1} parent=1 // pred_check
      _
    $region27: #{tpu_custom_call.1} parent=1 // pred_check_branch
      %26 = sbr.rel (0) target = $region29
    $region28: #{tpu_custom_call.1} parent=1 // pred_region
      _
    $region29: #{tpu_custom_call.1} parent=1 // pred_fallthru
      _
    %p27 = scmp.eq.s32.totalorder 0, 0
    // Predicated region
    $region30: #{tpu_custom_call.1} parent=1 // pred_check
      %p28 = pneg %p27
    $region31: #{tpu_custom_call.1} parent=1 // pred_check_branch
      %30 = sbr.rel (%p28) target = $region33
    $region32: #{tpu_custom_call.1} parent=1 // pred_region
      %vm31 = vcmask 130048
      %32 = vst.msk [vmem:[#allocation2] sm:$0xff] %vm31, 0.0
    $region33: #{tpu_custom_call.1} parent=1 // pred_fallthru
      _
    %v33 = vlaneseq
    %v34 = vshrl.u32 %v33, 7
    %v35 = vld [vmem:[%s1] sm:$0x3]
    %v36 = vperm.slane %v35, 0
    %v37 = vperm.slane %v35, 1
    %vm38 = vcmp.eq.s32.totalorder %v34, %v36
    %vm39 = vcmp.eq.s32.totalorder %v34, %v37
    %v40 = vsel %vm38, 1, 0
    %v41 = vsel %vm39, 1, 0
    %v42 = vcvt.s32.f32 %v40
    %v43 = vcvt.s32.f32 %v41
    %v44 = vld [vmem:[#allocation2] sm:$0xff]
    %v45 = vld [vmem:[%s0] sm:$0xff]
    %v46 = vld [vmem:[%s0 + $0x8] sm:$0xff]
    %v47 = vld [vmem:[%s0 + $0x10] sm:$0xff]
    %v48 = vld [vmem:[%s0 + $0x18] sm:$0xff]
    %v49 = vld [vmem:[%s0 + $0x20] sm:$0xff]
    %v50 = vld [vmem:[%s0 + $0x28] sm:$0xff]
    %v51 = vld [vmem:[%s0 + $0x30] sm:$0xff]
    %v52 = vld [vmem:[%s0 + $0x38] sm:$0xff]
    %v53 = vld [vmem:[%s0 + $0x40] sm:$0xff]
    %v54 = vld [vmem:[%s0 + $0x48] sm:$0xff]
    %v55 = vld [vmem:[%s0 + $0x50] sm:$0xff]
    %v56 = vld [vmem:[%s0 + $0x58] sm:$0xff]
    %v57 = vld [vmem:[%s0 + $0x60] sm:$0xff]
    %v58 = vld [vmem:[%s0 + $0x68] sm:$0xff]
    %v59 = vld [vmem:[%s0 + $0x70] sm:$0xff]
    %v60 = vld [vmem:[%s0 + $0x78] sm:$0xff]
    %v61 = vld [vmem:[%s0 + $0x80] sm:$0xff]
    %v62 = vld [vmem:[%s0 + $0x88] sm:$0xff]
    %v63 = vld [vmem:[%s0 + $0x90] sm:$0xff]
    %v64 = vld [vmem:[%s0 + $0x98] sm:$0xff]
    %v65 = vld [vmem:[%s0 + $0xa0] sm:$0xff]
    %v66 = vld [vmem:[%s0 + $0xa8] sm:$0xff]
    %v67 = vld [vmem:[%s0 + $0xb0] sm:$0xff]
    %v68 = vld [vmem:[%s0 + $0xb8] sm:$0xff]
    %v69 = vld [vmem:[%s0 + $0xc0] sm:$0xff]
    %v70 = vld [vmem:[%s0 + $0xc8] sm:$0xff]
    %v71 = vld [vmem:[%s0 + $0xd0] sm:$0xff]
    %v72 = vld [vmem:[%s0 + $0xd8] sm:$0xff]
    %v73 = vld [vmem:[%s0 + $0xe0] sm:$0xff]
    %v74 = vld [vmem:[%s0 + $0xe8] sm:$0xff]
    %v75 = vld [vmem:[%s0 + $0xf0] sm:$0xff]
    %v76 = vld [vmem:[%s0 + $0xf8] sm:$0xff]
    %77 = vmatpush.msra.mxu0 %v60
    %78 = vmatpush.msra.mxu0 %v59
    %79 = vmatpush.msra.mxu0 %v58
    %80 = vmatpush.msra.mxu0 %v57
    %81 = vmatpush.msra.mxu0 %v56
    %82 = vmatpush.msra.mxu0 %v55
    %83 = vmatpush.msra.mxu0 %v54
    %84 = vmatpush.msra.mxu0 %v53
    %85 = vmatpush.msra.mxu0 %v52
    %86 = vmatpush.msra.mxu0 %v51
    %87 = vmatpush.msra.mxu0 %v50
    %88 = vmatpush.msra.mxu0 %v49
    %89 = vmatpush.msra.mxu0 %v48
    %90 = vmatpush.msra.mxu0 %v47
    %91 = vmatpush.msra.mxu0 %v46
    %92 = vmatpush.msra.mxu0 %v45
    %93 = vmatmul.f32.gmra.mxu0 %v42
    %v94 = vpop.f32.mrf.mxu0
    %v95 = vadd.f32 0.0, %v94
    %96 = vdwg.mxu0
    %97 = vmatpush.msra.mxu0 %v76
    %98 = vmatpush.msra.mxu0 %v75
    %99 = vmatpush.msra.mxu0 %v74
    %100 = vmatpush.msra.mxu0 %v73
    %101 = vmatpush.msra.mxu0 %v72
    %102 = vmatpush.msra.mxu0 %v71
    %103 = vmatpush.msra.mxu0 %v70
    %104 = vmatpush.msra.mxu0 %v69
    %105 = vmatpush.msra.mxu0 %v68
    %106 = vmatpush.msra.mxu0 %v67
    %107 = vmatpush.msra.mxu0 %v66
    %108 = vmatpush.msra.mxu0 %v65
    %109 = vmatpush.msra.mxu0 %v64
    %110 = vmatpush.msra.mxu0 %v63
    %111 = vmatpush.msra.mxu0 %v62
    %112 = vmatpush.msra.mxu0 %v61
    %113 = vmatmul.f32.gmra.mxu0 %v43
    %v114 = vpop.f32.mrf.mxu0
    %v115 = vadd.f32 %v95, %v114
    %116 = vdwg.mxu0
    %v117 = vadd.f32 %v44, %v115
    %vm118 = vcmask 130048
    %119 = vst.msk [vmem:[#allocation2] sm:$0xff] %vm118, %v117
    // Predicated region
    $region34: #{tpu_custom_call.1} parent=1 // pred_check
      %p120 = pneg %p27
    $region35: #{tpu_custom_call.1} parent=1 // pred_check_branch
      %122 = sbr.rel (%p120) target = $region37
    $region36: #{tpu_custom_call.1} parent=1 // pred_region
      %v123 = vld [vmem:[#allocation2] sm:$0xff]
      %v124 = vld [vmem:[%s2] sm:$0xff]
      %126 = vset.pattern.permute.xlu0 0
      %127 = vperm.xlu0 %126, %v124
      %v128 = vpop.permute.xlu0 %127
      %v130 = vmul.f32 %v123, %v128
      %v131 = vld [vmem:[%s3] sm:$0xff]
      %v132 = vld [vmem:[%s3 + $0x8] sm:$0xff]
      %v133 = vld [vmem:[%s4] sm:$0x1]
      %v135 = vperm.slane %v133, 0
      %v138 = vsel %vm118, %v130, 0
      %140 = vmatpush.msra.mxu0 0.0
      %141 = vmatpush.msra.mxu0 0.0
      %142 = vmatpush.msra.mxu0 0.0
      %143 = vmatpush.msra.mxu0 0.0
      %144 = vmatpush.msra.mxu0 0.0
      %145 = vmatpush.msra.mxu0 0.0
      %146 = vmatpush.msra.mxu0 0.0
      %147 = vmatpush.msra.mxu0 0.0
      %148 = vmatpush.msra.mxu0 0.0
      %149 = vmatpush.msra.mxu0 0.0
      %150 = vmatpush.msra.mxu0 0.0
      %151 = vmatpush.msra.mxu0 0.0
      %152 = vmatpush.msra.mxu0 0.0
      %153 = vmatpush.msra.mxu0 0.0
      %154 = vmatpush.msra.mxu0 %v132
      %155 = vmatpush.msra.mxu0 %v131
      %156 = vmatmul.f32.gmra.mxu0 %v138
      %v157 = vpop.f32.mrf.mxu0
      %v158 = vadd.f32 %v135, %v157
      %159 = vdwg.mxu0
      %v160 = vmax.f32 %v158, 0.0
      %v161 = vld [vmem:[%s5] sm:$0xff]
      %v162 = vld [vmem:[%s5 + $0x8] sm:$0xff]
      %v163 = vld [vmem:[%s5 + $0x10] sm:$0xff]
      %v164 = vld [vmem:[%s5 + $0x18] sm:$0xff]
      %v165 = vld [vmem:[%s6] sm:$0x1]
      %v167 = vperm.slane %v165, 0
      %vm169 = vcmask 261120
      %v171 = vsel %vm169, %v160, 0
      %173 = vmatpush.msra.mxu0 0.0
      %174 = vmatpush.msra.mxu0 0.0
      %175 = vmatpush.msra.mxu0 0.0
      %176 = vmatpush.msra.mxu0 0.0
      %177 = vmatpush.msra.mxu0 0.0
      %178 = vmatpush.msra.mxu0 0.0
      %179 = vmatpush.msra.mxu0 0.0
      %180 = vmatpush.msra.mxu0 0.0
      %181 = vmatpush.msra.mxu0 0.0
      %182 = vmatpush.msra.mxu0 0.0
      %183 = vmatpush.msra.mxu0 0.0
      %184 = vmatpush.msra.mxu0 0.0
      %185 = vmatpush.msra.mxu0 %v164
      %186 = vmatpush.msra.mxu0 %v163
      %187 = vmatpush.msra.mxu0 %v162
      %188 = vmatpush.msra.mxu0 %v161
      %189 = vmatmul.f32.gmra.mxu0 %v171
      %v190 = vpop.f32.mrf.mxu0
      %v191 = vadd.f32 %v167, %v190
      %192 = vdwg.mxu0
      %v193 = vmax.f32 %v191, -10.0
      %v194 = vmin.f32 %v193, 10.0
      %v195 = vlaneseq
      %v196 = vand.u32 %v195, 127
      %vm197 = vcmp.lt.s32.totalorder %v196, 8
      %v198 = vsel %vm197, %v194, -1e+30
      %199 = vmax.xlane.f32.xlu0 %v198
      %v200 = vpop.xlane.xlu0 %199
      %v201 = vsub.f32 %v198, %v200
      %v202 = vmul.f32 %v201, 1.442695
      %v203 = vpow.pop %v202
      %v204 = vsel %vm197, %v203, 0.0
      %205 = vadd.xlane.f32.xlu0 %v204
      %v206 = vpop.xlane.xlu0 %205
      %v207 = vlog2.pop %v206
      %v208 = vmul.f32 %v207, 0.6931472
      %v209 = vsub.f32 %v201, %v208
      %210 = vst [vmem:[#allocation3] sm:$0xff] %v209
      %211 = vst [vmem:[#allocation3 + $0x8] sm:$0xff] %v194
    $region37: #{tpu_custom_call.1} parent=1 // pred_fallthru
      _
    // Predicated region
    $region38: #{tpu_custom_call.1} parent=1 // pred_check
      _
    $region39: #{tpu_custom_call.1} parent=1 // pred_check_branch
      %213 = sbr.rel (0) target = $region41
    $region40: #{tpu_custom_call.1} parent=1 // pred_region
      %215 = vsyncadd [#allocation4], 0
      %s217 = sshll.u32 [#allocation3], 4
      %s218 = int_to_ptr.vmem [resolvable:$true] %s217
      %s219 = sshll.u32 %s7, 4
      %s220 = int_to_ptr.hbm [resolvable:$true] %s219
      %222 = dma.vmem_to_hbm [thread:$0]  %s218, 256, %s220, [#allocation4]
    $region41: #{tpu_custom_call.1} parent=1 // pred_fallthru
      _
    // Predicated region
    $region42: #{tpu_custom_call.1} parent=1 // pred_check
      _
    $region43: #{tpu_custom_call.1} parent=1 // pred_check_branch
      %224 = sbr.rel (0) target = $region45
    $region44: #{tpu_custom_call.1} parent=1 // pred_region
      %226 = dma.done [#allocation4], 256
    $region45: #{tpu_custom_call.1} parent=1 // pred_fallthru
      _
    %227 = vsyncpa [#allocation4], 1

</llo_original>
